<compile_context>
chip_gen: v7x
topology: tpu7x:2x2x1
jax: 0.10.0
libtpu: 0.0.40
codegen_flags: <defaults>
</compile_context>

<pallas_src>
import jax
import jax.numpy as jnp
from jax.experimental import pallas as pl
from jax.experimental.pallas import tpu as pltpu

EPS = 1e-5  # PyTorch BatchNorm2d default


# --------------------------------------------------------------------------
# Kernel
# --------------------------------------------------------------------------
def resblock_kernel(x_ref, wd1_ref, sc1_ref, sh1_ref, wd2_ref, sc2_ref, sh2_ref,
                    out_ref, pad_ref):
    # x_ref:   (NB, H, W*C)            NB batch elems, lane-dense (lane = w*C+c)
    # wdN_ref: (3, W*C, W*C)           per-dy band weights (dx shift + chan mix)
    # scN_ref: (1, W*C)                folded BN scale, tiled over W
    # shN_ref: (1, W*C)                folded conv-bias + BN shift, tiled over W
    # out_ref: (NB, H, W*C)
    # pad_ref: (NB*(H+2), W*C)         f32 scratch, NB padded images stacked
    NB, H, WC = x_ref.shape
    HP = H + 2
    R = NB * HP

    # Zero only the halo rows; interiors are overwritten before each conv.
    zero_row = jnp.zeros((1, WC), jnp.float32)
    for n in range(NB):
        pad_ref[n * HP:n * HP + 1, :] = zero_row
        pad_ref[n * HP + H + 1:n * HP + H + 2, :] = zero_row

    def conv3x3(wd_ref):
        # 3 lane-dense MXU matmuls over the whole stacked block, K = W*C.
        acc = jnp.dot(pad_ref[0:R - 2, :], wd_ref[0],
                      preferred_element_type=jnp.float32)
        for dy in range(1, 3):
            acc += jnp.dot(pad_ref[dy:dy + R - 2, :], wd_ref[dy],
                           preferred_element_type=jnp.float32)
        # Output row (n, h) lives at acc row n*HP + h; rows straddling halos
        # are garbage and are simply never read.
        return acc

    # ---- conv1 + bn1 + relu ----
    for n in range(NB):
        pad_ref[n * HP + 1:n * HP + 1 + H, :] = x_ref[n].astype(jnp.float32)
    y1 = jnp.maximum(conv3x3(wd1_ref) * sc1_ref[...] + sh1_ref[...], 0.0)

    # ---- conv2 + bn2 (write y1 straight back into the pad interior) ----
    for n in range(NB):
        pad_ref[n * HP + 1:n * HP + 1 + H, :] = y1[n * HP:n * HP + H, :]
    y2 = conv3x3(wd2_ref) * sc2_ref[...] + sh2_ref[...]

    # ---- residual add (re-read x to keep its live range short) + relu ----
    for n in range(NB):
        out_ref[n] = jnp.maximum(
            y2[n * HP:n * HP + H, :] + x_ref[n].astype(jnp.float32),
            0.0).astype(out_ref.dtype)


def _pick_batch_block(N, max_nb=8):
    """Largest divisor of N that is <= max_nb (so the grid tiles exactly)."""
    for nb in range(min(N, max_nb), 0, -1):
        if N % nb == 0:
            return nb
    return 1


def resblock_pallas(x_ld, wd1, sc1, sh1, wd2, sc2, sh2):
    """x_ld: (N, H, W*C) lane-dense activations."""
    N, H, WC = x_ld.shape
    NB = _pick_batch_block(N)
    act_spec = pl.BlockSpec((NB, H, WC), lambda n: (n, 0, 0))
    w_spec = pl.BlockSpec((3, WC, WC), lambda n: (0, 0, 0))
    v_spec = pl.BlockSpec((1, WC), lambda n: (0, 0))
    return pl.pallas_call(
        resblock_kernel,
        out_shape=jax.ShapeDtypeStruct((N, H, WC), x_ld.dtype),
        grid_spec=pltpu.PrefetchScalarGridSpec(
            num_scalar_prefetch=0,
            grid=(N // NB,),
            in_specs=[act_spec, w_spec, v_spec, v_spec, w_spec, v_spec, v_spec],
            out_specs=act_spec,
            scratch_shapes=[pltpu.VMEM((NB * (H + 2), WC), jnp.float32)],
        ),
        compiler_params=pltpu.CompilerParams(
            dimension_semantics=("parallel",)),
    )(x_ld, wd1, sc1, sh1, wd2, sc2, sh2)


# --------------------------------------------------------------------------
# One-time parameter preparation (out of the hot path)
# --------------------------------------------------------------------------
def prepare_resblock_params(p, W):
    """Fold conv weights into per-dy band matrices and BN into scale/shift."""
    C = p["w1"].shape[0]
    WC = W * C

    def band_weights(w_oihw):
        # (Cout, Cin, 3, 3) -> (ky, kx, Cin, Cout)
        w = jnp.transpose(w_oihw, (2, 3, 1, 0))
        mats = []
        for dy in range(3):
            m = jnp.zeros((WC, WC), w.dtype)
            for dx in range(3):
                # out[wout] takes in[win] with win = wout + dx - 1
                m = m + jnp.kron(jnp.eye(W, k=1 - dx, dtype=w.dtype), w[dy, dx])
            mats.append(m)
        return jnp.stack(mats)  # (3, WC, WC)

    def fold(b, g, be, m, v):
        s = g / jnp.sqrt(v + EPS)
        t = be - m * s
        scale = jnp.tile(s, W).reshape(1, WC)          # lane w*C+c -> s[c]
        shift = jnp.tile(b * s + t, W).reshape(1, WC)  # conv bias folded in
        return scale, shift

    sc1, sh1 = fold(p["b1"], p["g1"], p["be1"], p["m1"], p["v1"])
    sc2, sh2 = fold(p["b2"], p["g2"], p["be2"], p["m2"], p["v2"])
    return {"wd1": band_weights(p["w1"]), "sc1": sc1, "sh1": sh1,
            "wd2": band_weights(p["w2"]), "sc2": sc2, "sh2": sh2}


def resblock_forward(x_nchw, prep):
    """PyTorch-equivalent forward. x_nchw: (N, C, H, W)."""
    N, C, H, W = x_nchw.shape
    # NCHW -> lane-dense (N, H, W*C); layout chosen so W*C is 128-lane dense.
    x_ld = jnp.transpose(x_nchw, (0, 2, 3, 1)).reshape(N, H, W * C)
    out = resblock_pallas(x_ld, prep["wd1"], prep["sc1"], prep["sh1"],
                          prep["wd2"], prep["sc2"], prep["sh2"])
    return jnp.transpose(out.reshape(N, H, W, C), (0, 3, 1, 2))


# --------------------------------------------------------------------------
# Pure-JAX reference (eval-mode BN), NCHW, matches PyTorch semantics
# --------------------------------------------------------------------------
def resblock_reference(x, p):
    def conv(h, w, b):
        y = jax.lax.conv_general_dilated(
            h, w, window_strides=(1, 1), padding=((1, 1), (1, 1)),
            dimension_numbers=("NCHW", "OIHW", "NCHW"))
        return y + b[None, :, None, None]

    def bn(h, g, be, m, v):
        return (g[None, :, None, None] * (h - m[None, :, None, None])
                / jnp.sqrt(v[None, :, None, None] + EPS)
                + be[None, :, None, None])

    h = jax.nn.relu(bn(conv(x, p["w1"], p["b1"]),
                       p["g1"], p["be1"], p["m1"], p["v1"]))
    h = bn(conv(h, p["w2"], p["b2"]), p["g2"], p["be2"], p["m2"], p["v2"])
    return jax.nn.relu(h + x)


if __name__ == "__main__":
    N, C, H, W = 2, 8, 16, 16  # numFilters = 8; W*C = 128 (lane-dense)
    key = jax.random.PRNGKey(0)
    ks = jax.random.split(key, 13)

    x = jax.random.normal(ks[0], (N, C, H, W), jnp.float32)

    params = {
        # conv1 / conv2 : PyTorch Conv2d weight layout (Cout, Cin, kH, kW)
        "w1": 0.1 * jax.random.normal(ks[1], (C, C, 3, 3), jnp.float32),
        "b1": 0.1 * jax.random.normal(ks[2], (C,), jnp.float32),
        "w2": 0.1 * jax.random.normal(ks[3], (C, C, 3, 3), jnp.float32),
        "b2": 0.1 * jax.random.normal(ks[4], (C,), jnp.float32),
        # BatchNorm2d 1 (gamma, beta, running_mean, running_var)
        "g1": 1.0 + 0.1 * jax.random.normal(ks[5], (C,), jnp.float32),
        "be1": 0.1 * jax.random.normal(ks[6], (C,), jnp.float32),
        "m1": 0.1 * jax.random.normal(ks[7], (C,), jnp.float32),
        "v1": 0.5 + jnp.abs(jax.random.normal(ks[8], (C,), jnp.float32)),
        # BatchNorm2d 2
        "g2": 1.0 + 0.1 * jax.random.normal(ks[9], (C,), jnp.float32),
        "be2": 0.1 * jax.random.normal(ks[10], (C,), jnp.float32),
        "m2": 0.1 * jax.random.normal(ks[11], (C,), jnp.float32),
        "v2": 0.5 + jnp.abs(jax.random.normal(ks[12], (C,), jnp.float32)),
    }

    # One-time weight/BN folding (kept out of the per-step hot path).
    prep = jax.tree_util.tree_map(jax.block_until_ready,
                                  prepare_resblock_params(params, W))

    fwd = jax.jit(resblock_forward)
    out = jax.block_until_ready(fwd(x, prep))
    ref = jax.block_until_ready(resblock_reference(x, params))

    assert out.shape == (N, C, H, W)
    assert jnp.allclose(out, ref, atol=1e-4, rtol=1e-4), (
        f"max abs err = {jnp.max(jnp.abs(out - ref))}")
    print("KERNEL_OK")
</pallas_src>

<mosaic_0001>
module attributes {stable_mosaic.version = 11 : i64} {
  func.func @resblock_kernel(%arg0: i32, %arg1: memref<2x16x128xf32, #tpu.memory_space<vmem>>, %arg2: memref<3x128x128xf32, #tpu.memory_space<vmem>>, %arg3: memref<1x128xf32, #tpu.memory_space<vmem>>, %arg4: memref<1x128xf32, #tpu.memory_space<vmem>>, %arg5: memref<3x128x128xf32, #tpu.memory_space<vmem>>, %arg6: memref<1x128xf32, #tpu.memory_space<vmem>>, %arg7: memref<1x128xf32, #tpu.memory_space<vmem>>, %arg8: memref<2x16x128xf32, #tpu.memory_space<vmem>>, %arg9: memref<36x128xf32, #tpu.memory_space<vmem>>) attributes {dimension_semantics = [#tpu.dimension_semantics<parallel>], iteration_bounds = array<i64: 1>, scalar_prefetch = 0 : i64, scratch_operands = 1 : i64, tpu.core_type = #tpu.core_type<tc>, window_params = [{transform_indices = @transform_0, window_bounds = array<i64: 2, 16, 128>}, {pipeline_mode = #tpu.pipeline_mode<synchronous>, transform_indices = @transform_1, window_bounds = array<i64: 3, 128, 128>}, {pipeline_mode = #tpu.pipeline_mode<synchronous>, transform_indices = @transform_2, window_bounds = array<i64: 1, 128>}, {pipeline_mode = #tpu.pipeline_mode<synchronous>, transform_indices = @transform_3, window_bounds = array<i64: 1, 128>}, {pipeline_mode = #tpu.pipeline_mode<synchronous>, transform_indices = @transform_4, window_bounds = array<i64: 3, 128, 128>}, {pipeline_mode = #tpu.pipeline_mode<synchronous>, transform_indices = @transform_5, window_bounds = array<i64: 1, 128>}, {pipeline_mode = #tpu.pipeline_mode<synchronous>, transform_indices = @transform_6, window_bounds = array<i64: 1, 128>}, {transform_indices = @transform_7, window_bounds = array<i64: 2, 16, 128>}]} {
    %cst = arith.constant 0.000000e+00 : f32
    %0 = vector.broadcast %cst : f32 to vector<1x128xf32>
    %c0 = arith.constant 0 : index
    %c0_0 = arith.constant 0 : index
    %1 = vector.load %arg9[%c0, %c0_0] : memref<36x128xf32, #tpu.memory_space<vmem>>, vector<1x128xf32>
    tpu.vector_store %arg9[%c0, %c0_0], %0 {strides = array<i32>} : memref<36x128xf32, #tpu.memory_space<vmem>>, vector<1x128xf32>,
    %c17 = arith.constant 17 : index
    %c0_1 = arith.constant 0 : index
    %2 = vector.load %arg9[%c17, %c0_1] : memref<36x128xf32, #tpu.memory_space<vmem>>, vector<1x128xf32>
    tpu.vector_store %arg9[%c17, %c0_1], %0 {strides = array<i32>} : memref<36x128xf32, #tpu.memory_space<vmem>>, vector<1x128xf32>,
    %c18 = arith.constant 18 : index
    %c0_2 = arith.constant 0 : index
    %3 = vector.load %arg9[%c18, %c0_2] : memref<36x128xf32, #tpu.memory_space<vmem>>, vector<1x128xf32>
    tpu.vector_store %arg9[%c18, %c0_2], %0 {strides = array<i32>} : memref<36x128xf32, #tpu.memory_space<vmem>>, vector<1x128xf32>,
    %c35 = arith.constant 35 : index
    %c0_3 = arith.constant 0 : index
    %4 = vector.load %arg9[%c35, %c0_3] : memref<36x128xf32, #tpu.memory_space<vmem>>, vector<1x128xf32>
    tpu.vector_store %arg9[%c35, %c0_3], %0 {strides = array<i32>} : memref<36x128xf32, #tpu.memory_space<vmem>>, vector<1x128xf32>,
    %c0_4 = arith.constant 0 : index
    %c0_5 = arith.constant 0 : index
    %c0_6 = arith.constant 0 : index
    %5 = vector.load %arg1[%c0_4, %c0_5, %c0_6] : memref<2x16x128xf32, #tpu.memory_space<vmem>>, vector<1x16x128xf32>
    %6 = vector.shape_cast %5 : vector<1x16x128xf32> to vector<16x128xf32>
    %c1 = arith.constant 1 : index
    %c0_7 = arith.constant 0 : index
    %7 = vector.load %arg9[%c1, %c0_7] : memref<36x128xf32, #tpu.memory_space<vmem>>, vector<16x128xf32>
    tpu.vector_store %arg9[%c1, %c0_7], %6 {strides = array<i32>} : memref<36x128xf32, #tpu.memory_space<vmem>>, vector<16x128xf32>,
    %c1_8 = arith.constant 1 : index
    %c0_9 = arith.constant 0 : index
    %c0_10 = arith.constant 0 : index
    %8 = vector.load %arg1[%c1_8, %c0_9, %c0_10] : memref<2x16x128xf32, #tpu.memory_space<vmem>>, vector<1x16x128xf32>
    %9 = vector.shape_cast %8 : vector<1x16x128xf32> to vector<16x128xf32>
    %c19 = arith.constant 19 : index
    %c0_11 = arith.constant 0 : index
    %10 = vector.load %arg9[%c19, %c0_11] : memref<36x128xf32, #tpu.memory_space<vmem>>, vector<16x128xf32>
    tpu.vector_store %arg9[%c19, %c0_11], %9 {strides = array<i32>} : memref<36x128xf32, #tpu.memory_space<vmem>>, vector<16x128xf32>,
    %c0_12 = arith.constant 0 : index
    %c0_13 = arith.constant 0 : index
    %11 = vector.load %arg9[%c0_12, %c0_13] : memref<36x128xf32, #tpu.memory_space<vmem>>, vector<34x128xf32>
    %c0_14 = arith.constant 0 : index
    %c0_15 = arith.constant 0 : index
    %c0_16 = arith.constant 0 : index
    %12 = vector.load %arg2[%c0_14, %c0_15, %c0_16] : memref<3x128x128xf32, #tpu.memory_space<vmem>>, vector<1x128x128xf32>
    %13 = vector.shape_cast %12 : vector<1x128x128xf32> to vector<128x128xf32>
    %cst_17 = arith.constant dense<0.000000e+00> : vector<34x128xf32>
    %14 = tpu.matmul %11, %13, %cst_17 {dimension_numbers = #tpu.dot_dimension_numbers<[1], [0], [0], [1], [0, 0, 1, 1], [], []>} : vector<34x128xf32>, vector<128x128xf32>, vector<34x128xf32> -> vector<34x128xf32>
    %c1_18 = arith.constant 1 : index
    %c0_19 = arith.constant 0 : index
    %15 = vector.load %arg9[%c1_18, %c0_19] : memref<36x128xf32, #tpu.memory_space<vmem>>, vector<34x128xf32>
    %c1_20 = arith.constant 1 : index
    %c0_21 = arith.constant 0 : index
    %c0_22 = arith.constant 0 : index
    %16 = vector.load %arg2[%c1_20, %c0_21, %c0_22] : memref<3x128x128xf32, #tpu.memory_space<vmem>>, vector<1x128x128xf32>
    %17 = vector.shape_cast %16 : vector<1x128x128xf32> to vector<128x128xf32>
    %cst_23 = arith.constant dense<0.000000e+00> : vector<34x128xf32>
    %18 = tpu.matmul %15, %17, %cst_23 {dimension_numbers = #tpu.dot_dimension_numbers<[1], [0], [0], [1], [0, 0, 1, 1], [], []>} : vector<34x128xf32>, vector<128x128xf32>, vector<34x128xf32> -> vector<34x128xf32>
    %19 = arith.addf %14, %18 : vector<34x128xf32>
    %c2 = arith.constant 2 : index
    %c0_24 = arith.constant 0 : index
    %20 = vector.load %arg9[%c2, %c0_24] : memref<36x128xf32, #tpu.memory_space<vmem>>, vector<34x128xf32>
    %c2_25 = arith.constant 2 : index
    %c0_26 = arith.constant 0 : index
    %c0_27 = arith.constant 0 : index
    %21 = vector.load %arg2[%c2_25, %c0_26, %c0_27] : memref<3x128x128xf32, #tpu.memory_space<vmem>>, vector<1x128x128xf32>
    %22 = vector.shape_cast %21 : vector<1x128x128xf32> to vector<128x128xf32>
    %cst_28 = arith.constant dense<0.000000e+00> : vector<34x128xf32>
    %23 = tpu.matmul %20, %22, %cst_28 {dimension_numbers = #tpu.dot_dimension_numbers<[1], [0], [0], [1], [0, 0, 1, 1], [], []>} : vector<34x128xf32>, vector<128x128xf32>, vector<34x128xf32> -> vector<34x128xf32>
    %24 = arith.addf %19, %23 : vector<34x128xf32>
    %c0_29 = arith.constant 0 : index
    %c0_30 = arith.constant 0 : index
    %25 = vector.load %arg3[%c0_29, %c0_30] : memref<1x128xf32, #tpu.memory_space<vmem>>, vector<1x128xf32>
    %26 = vector.broadcast %25 : vector<1x128xf32> to vector<34x128xf32>
    %27 = arith.mulf %24, %26 : vector<34x128xf32>
    %c0_31 = arith.constant 0 : index
    %c0_32 = arith.constant 0 : index
    %28 = vector.load %arg4[%c0_31, %c0_32] : memref<1x128xf32, #tpu.memory_space<vmem>>, vector<1x128xf32>
    %29 = vector.broadcast %28 : vector<1x128xf32> to vector<34x128xf32>
    %30 = arith.addf %27, %29 : vector<34x128xf32>
    %cst_33 = arith.constant 0.000000e+00 : f32
    %31 = vector.broadcast %cst_33 : f32 to vector<34x128xf32>
    %32 = arith.maximumf %30, %31 : vector<34x128xf32>
    %33 = vector.extract_strided_slice %32 {offsets = [0, 0], sizes = [16, 128], strides = [1, 1]} : vector<34x128xf32> to vector<16x128xf32>
    %c1_34 = arith.constant 1 : index
    %c0_35 = arith.constant 0 : index
    %34 = vector.load %arg9[%c1_34, %c0_35] : memref<36x128xf32, #tpu.memory_space<vmem>>, vector<16x128xf32>
    tpu.vector_store %arg9[%c1_34, %c0_35], %33 {strides = array<i32>} : memref<36x128xf32, #tpu.memory_space<vmem>>, vector<16x128xf32>,
    %35 = vector.extract_strided_slice %32 {offsets = [18, 0], sizes = [16, 128], strides = [1, 1]} : vector<34x128xf32> to vector<16x128xf32>
    %c19_36 = arith.constant 19 : index
    %c0_37 = arith.constant 0 : index
    %36 = vector.load %arg9[%c19_36, %c0_37] : memref<36x128xf32, #tpu.memory_space<vmem>>, vector<16x128xf32>
    tpu.vector_store %arg9[%c19_36, %c0_37], %35 {strides = array<i32>} : memref<36x128xf32, #tpu.memory_space<vmem>>, vector<16x128xf32>,
    %c0_38 = arith.constant 0 : index
    %c0_39 = arith.constant 0 : index
    %37 = vector.load %arg9[%c0_38, %c0_39] : memref<36x128xf32, #tpu.memory_space<vmem>>, vector<34x128xf32>
    %c0_40 = arith.constant 0 : index
    %c0_41 = arith.constant 0 : index
    %c0_42 = arith.constant 0 : index
    %38 = vector.load %arg5[%c0_40, %c0_41, %c0_42] : memref<3x128x128xf32, #tpu.memory_space<vmem>>, vector<1x128x128xf32>
    %39 = vector.shape_cast %38 : vector<1x128x128xf32> to vector<128x128xf32>
    %cst_43 = arith.constant dense<0.000000e+00> : vector<34x128xf32>
    %40 = tpu.matmul %37, %39, %cst_43 {dimension_numbers = #tpu.dot_dimension_numbers<[1], [0], [0], [1], [0, 0, 1, 1], [], []>} : vector<34x128xf32>, vector<128x128xf32>, vector<34x128xf32> -> vector<34x128xf32>
    %c1_44 = arith.constant 1 : index
    %c0_45 = arith.constant 0 : index
    %41 = vector.load %arg9[%c1_44, %c0_45] : memref<36x128xf32, #tpu.memory_space<vmem>>, vector<34x128xf32>
    %c1_46 = arith.constant 1 : index
    %c0_47 = arith.constant 0 : index
    %c0_48 = arith.constant 0 : index
    %42 = vector.load %arg5[%c1_46, %c0_47, %c0_48] : memref<3x128x128xf32, #tpu.memory_space<vmem>>, vector<1x128x128xf32>
    %43 = vector.shape_cast %42 : vector<1x128x128xf32> to vector<128x128xf32>
    %cst_49 = arith.constant dense<0.000000e+00> : vector<34x128xf32>
    %44 = tpu.matmul %41, %43, %cst_49 {dimension_numbers = #tpu.dot_dimension_numbers<[1], [0], [0], [1], [0, 0, 1, 1], [], []>} : vector<34x128xf32>, vector<128x128xf32>, vector<34x128xf32> -> vector<34x128xf32>
    %45 = arith.addf %40, %44 : vector<34x128xf32>
    %c2_50 = arith.constant 2 : index
    %c0_51 = arith.constant 0 : index
    %46 = vector.load %arg9[%c2_50, %c0_51] : memref<36x128xf32, #tpu.memory_space<vmem>>, vector<34x128xf32>
    %c2_52 = arith.constant 2 : index
    %c0_53 = arith.constant 0 : index
    %c0_54 = arith.constant 0 : index
    %47 = vector.load %arg5[%c2_52, %c0_53, %c0_54] : memref<3x128x128xf32, #tpu.memory_space<vmem>>, vector<1x128x128xf32>
    %48 = vector.shape_cast %47 : vector<1x128x128xf32> to vector<128x128xf32>
    %cst_55 = arith.constant dense<0.000000e+00> : vector<34x128xf32>
    %49 = tpu.matmul %46, %48, %cst_55 {dimension_numbers = #tpu.dot_dimension_numbers<[1], [0], [0], [1], [0, 0, 1, 1], [], []>} : vector<34x128xf32>, vector<128x128xf32>, vector<34x128xf32> -> vector<34x128xf32>
    %50 = arith.addf %45, %49 : vector<34x128xf32>
    %c0_56 = arith.constant 0 : index
    %c0_57 = arith.constant 0 : index
    %51 = vector.load %arg6[%c0_56, %c0_57] : memref<1x128xf32, #tpu.memory_space<vmem>>, vector<1x128xf32>
    %52 = vector.broadcast %51 : vector<1x128xf32> to vector<34x128xf32>
    %53 = arith.mulf %50, %52 : vector<34x128xf32>
    %c0_58 = arith.constant 0 : index
    %c0_59 = arith.constant 0 : index
    %54 = vector.load %arg7[%c0_58, %c0_59] : memref<1x128xf32, #tpu.memory_space<vmem>>, vector<1x128xf32>
    %55 = vector.broadcast %54 : vector<1x128xf32> to vector<34x128xf32>
    %56 = arith.addf %53, %55 : vector<34x128xf32>
    %57 = vector.extract_strided_slice %56 {offsets = [0, 0], sizes = [16, 128], strides = [1, 1]} : vector<34x128xf32> to vector<16x128xf32>
    %c0_60 = arith.constant 0 : index
    %c0_61 = arith.constant 0 : index
    %c0_62 = arith.constant 0 : index
    %58 = vector.load %arg1[%c0_60, %c0_61, %c0_62] : memref<2x16x128xf32, #tpu.memory_space<vmem>>, vector<1x16x128xf32>
    %59 = vector.shape_cast %58 : vector<1x16x128xf32> to vector<16x128xf32>
    %60 = arith.addf %57, %59 : vector<16x128xf32>
    %cst_63 = arith.constant 0.000000e+00 : f32
    %61 = vector.broadcast %cst_63 : f32 to vector<16x128xf32>
    %62 = arith.maximumf %60, %61 : vector<16x128xf32>
    %c0_64 = arith.constant 0 : index
    %c0_65 = arith.constant 0 : index
    %c0_66 = arith.constant 0 : index
    %63 = vector.load %arg8[%c0_64, %c0_65, %c0_66] : memref<2x16x128xf32, #tpu.memory_space<vmem>>, vector<1x16x128xf32>
    %64 = vector.shape_cast %63 : vector<1x16x128xf32> to vector<16x128xf32>
    %65 = vector.shape_cast %62 : vector<16x128xf32> to vector<1x16x128xf32>
    tpu.vector_store %arg8[%c0_64, %c0_65, %c0_66], %65 {strides = array<i32>} : memref<2x16x128xf32, #tpu.memory_space<vmem>>, vector<1x16x128xf32>,
    %66 = vector.extract_strided_slice %56 {offsets = [18, 0], sizes = [16, 128], strides = [1, 1]} : vector<34x128xf32> to vector<16x128xf32>
    %c1_67 = arith.constant 1 : index
    %c0_68 = arith.constant 0 : index
    %c0_69 = arith.constant 0 : index
    %67 = vector.load %arg1[%c1_67, %c0_68, %c0_69] : memref<2x16x128xf32, #tpu.memory_space<vmem>>, vector<1x16x128xf32>
    %68 = vector.shape_cast %67 : vector<1x16x128xf32> to vector<16x128xf32>
    %69 = arith.addf %66, %68 : vector<16x128xf32>
    %cst_70 = arith.constant 0.000000e+00 : f32
    %70 = vector.broadcast %cst_70 : f32 to vector<16x128xf32>
    %71 = arith.maximumf %69, %70 : vector<16x128xf32>
    %c1_71 = arith.constant 1 : index
    %c0_72 = arith.constant 0 : index
    %c0_73 = arith.constant 0 : index
    %72 = vector.load %arg8[%c1_71, %c0_72, %c0_73] : memref<2x16x128xf32, #tpu.memory_space<vmem>>, vector<1x16x128xf32>
    %73 = vector.shape_cast %72 : vector<1x16x128xf32> to vector<16x128xf32>
    %74 = vector.shape_cast %71 : vector<16x128xf32> to vector<1x16x128xf32>
    tpu.vector_store %arg8[%c1_71, %c0_72, %c0_73], %74 {strides = array<i32>} : memref<2x16x128xf32, #tpu.memory_space<vmem>>, vector<1x16x128xf32>,
    return
  }
  func.func @transform_0(%arg0: i32) -> (i32, i32, i32) {
    %c0_i32 = arith.constant 0 : i32
    %c0_i32_0 = arith.constant 0 : i32
    %c0_i32_1 = arith.constant 0 : i32
    return %arg0, %c0_i32, %c0_i32_0 : i32, i32, i32
  }
  func.func @transform_1(%arg0: i32) -> (i32, i32, i32) {
    %c0_i32 = arith.constant 0 : i32
    %c0_i32_0 = arith.constant 0 : i32
    %c0_i32_1 = arith.constant 0 : i32
    %c0_i32_2 = arith.constant 0 : i32
    return %c0_i32, %c0_i32_0, %c0_i32_1 : i32, i32, i32
  }
  func.func @transform_2(%arg0: i32) -> (i32, i32) {
    %c0_i32 = arith.constant 0 : i32
    %c0_i32_0 = arith.constant 0 : i32
    %c0_i32_1 = arith.constant 0 : i32
    return %c0_i32, %c0_i32_0 : i32, i32
  }
  func.func @transform_3(%arg0: i32) -> (i32, i32) {
    %c0_i32 = arith.constant 0 : i32
    %c0_i32_0 = arith.constant 0 : i32
    %c0_i32_1 = arith.constant 0 : i32
    return %c0_i32, %c0_i32_0 : i32, i32
  }
  func.func @transform_4(%arg0: i32) -> (i32, i32, i32) {
    %c0_i32 = arith.constant 0 : i32
    %c0_i32_0 = arith.constant 0 : i32
    %c0_i32_1 = arith.constant 0 : i32
    %c0_i32_2 = arith.constant 0 : i32
    return %c0_i32, %c0_i32_0, %c0_i32_1 : i32, i32, i32
  }
  func.func @transform_5(%arg0: i32) -> (i32, i32) {
    %c0_i32 = arith.constant 0 : i32
    %c0_i32_0 = arith.constant 0 : i32
    %c0_i32_1 = arith.constant 0 : i32
    return %c0_i32, %c0_i32_0 : i32, i32
  }
  func.func @transform_6(%arg0: i32) -> (i32, i32) {
    %c0_i32 = arith.constant 0 : i32
    %c0_i32_0 = arith.constant 0 : i32
    %c0_i32_1 = arith.constant 0 : i32
    return %c0_i32, %c0_i32_0 : i32, i32
  }
  func.func @transform_7(%arg0: i32) -> (i32, i32, i32) {
    %c0_i32 = arith.constant 0 : i32
    %c0_i32_0 = arith.constant 0 : i32
    %c0_i32_1 = arith.constant 0 : i32
    return %arg0, %c0_i32, %c0_i32_0 : i32, i32, i32
  }
}

</mosaic_0001>

<llo_original>
// kernel: resblock_forward.1
$region0: #{resblock_forward.1}
  #allocation0 [shape = 'u32[]', space=smem, size = 0x4, offset = 0x4, fixed_abs, tag = 'smem constant byte address 0x4 - core index']
  #allocation1 [shape = 'u32[144,128]{1,0:T(1,128)}', space=vmem, size = 0x12000, scoped, tag = 'internal scratch']
  #allocation2 [shape = 'f32[36,128]{1,0:T(8,128)}', space=vmem, size = 0x5000, scoped, tag = 'scratch operand']
  %s0 = inlined_call_operand.vmem [shape: f32[2,16,128], index: 0, kind: input, shape index: {}]
  %s1 = inlined_call_operand.vmem [shape: f32[3,128,128], index: 1, kind: input, shape index: {}]
  %s2 = inlined_call_operand.vmem [shape: f32[1,128], index: 2, kind: input, shape index: {}]
  %s3 = inlined_call_operand.vmem [shape: f32[1,128], index: 3, kind: input, shape index: {}]
  %s4 = inlined_call_operand.vmem [shape: f32[3,128,128], index: 4, kind: input, shape index: {}]
  %s5 = inlined_call_operand.vmem [shape: f32[1,128], index: 5, kind: input, shape index: {}]
  %s6 = inlined_call_operand.vmem [shape: f32[1,128], index: 6, kind: input, shape index: {}]
  %s7 = inlined_call_operand.vmem [shape: f32[2,16,128], index: 7, kind: output, shape index: {}]
  %s8 = sld [smem:[#allocation0]]
  $region38: #{resblock_forward.1} parent=0
    _
  %s10 = ssub.s32 1, %s8
  %s11 = scalar_select 0, %s10, %s8
  // Predicated region
  $region2: #{resblock_forward.1} parent=0 // pred_check
    _
  $region3: #{resblock_forward.1} parent=0 // pred_check_branch
    %13 = sbr.rel (0) target = $region5
  $region4: #{resblock_forward.1} parent=0 // pred_region
    _
  $region5: #{resblock_forward.1} parent=0 // pred_fallthru
    _
  // Predicated region
  $region6: #{resblock_forward.1} parent=0 // pred_check
    _
  $region7: #{resblock_forward.1} parent=0 // pred_check_branch
    %15 = sbr.rel (0) target = $region9
  $region8: #{resblock_forward.1} parent=0 // pred_region
    _
  $region9: #{resblock_forward.1} parent=0 // pred_fallthru
    _
  // Predicated region
  $region10: #{resblock_forward.1} parent=0 // pred_check
    _
  $region11: #{resblock_forward.1} parent=0 // pred_check_branch
    %17 = sbr.rel (0) target = $region13
  $region12: #{resblock_forward.1} parent=0 // pred_region
    _
  $region13: #{resblock_forward.1} parent=0 // pred_fallthru
    _
  // Predicated region
  $region14: #{resblock_forward.1} parent=0 // pred_check
    _
  $region15: #{resblock_forward.1} parent=0 // pred_check_branch
    %19 = sbr.rel (0) target = $region17
  $region16: #{resblock_forward.1} parent=0 // pred_region
    _
  $region17: #{resblock_forward.1} parent=0 // pred_fallthru
    _
  // Predicated region
  $region18: #{resblock_forward.1} parent=0 // pred_check
    _
  $region19: #{resblock_forward.1} parent=0 // pred_check_branch
    %21 = sbr.rel (0) target = $region21
  $region20: #{resblock_forward.1} parent=0 // pred_region
    _
  $region21: #{resblock_forward.1} parent=0 // pred_fallthru
    _
  // Predicated region
  $region22: #{resblock_forward.1} parent=0 // pred_check
    _
  $region23: #{resblock_forward.1} parent=0 // pred_check_branch
    %23 = sbr.rel (0) target = $region25
  $region24: #{resblock_forward.1} parent=0 // pred_region
    _
  $region25: #{resblock_forward.1} parent=0 // pred_fallthru
    _
  // Predicated region
  $region26: #{resblock_forward.1} parent=0 // pred_check
    _
  $region27: #{resblock_forward.1} parent=0 // pred_check_branch
    %25 = sbr.rel (0) target = $region29
  $region28: #{resblock_forward.1} parent=0 // pred_region
    _
  $region29: #{resblock_forward.1} parent=0 // pred_fallthru
    _
  %26 = vst [vmem:[#allocation2] sm:$0x1] 0.0
  %27 = vst [vmem:[#allocation2 + $0x11] sm:$0x1] 0.0
  %28 = vst [vmem:[#allocation2 + $0x12] sm:$0x1] 0.0
  %29 = vst [vmem:[#allocation2 + $0x23] sm:$0x1] 0.0
  %v30 = vld [vmem:[%s0] sm:$0xff]
  %v31 = vld [vmem:[%s0 + $0x8] sm:$0xff]
  %32 = vst [vmem:[#allocation2 + $0x1] sm:$0xff] %v30
  %33 = vst [vmem:[#allocation2 + $0x9] sm:$0xff] %v31
  %s34 = scalar_lea.vmem %s0, 16
  %v35 = vld [vmem:[%s34] sm:$0xff]
  %v36 = vld [vmem:[%s34 + $0x8] sm:$0xff]
  %37 = vst [vmem:[#allocation2 + $0x13] sm:$0xff] %v35
  %38 = vst [vmem:[#allocation2 + $0x1b] sm:$0xff] %v36
  %v39 = vld [vmem:[#allocation2] sm:$0xff]
  %v40 = vld [vmem:[#allocation2 + $0x8] sm:$0xff]
  %v41 = vld [vmem:[#allocation2 + $0x10] sm:$0xff]
  %v42 = vld [vmem:[#allocation2 + $0x18] sm:$0xff]
  %v43 = vld [vmem:[#allocation2 + $0x20] sm:$0x3]
  %v44 = vld [vmem:[%s1] sm:$0xff]
  %v45 = vld [vmem:[%s1 + $0x8] sm:$0xff]
  %v46 = vld [vmem:[%s1 + $0x10] sm:$0xff]
  %v47 = vld [vmem:[%s1 + $0x18] sm:$0xff]
  %v48 = vld [vmem:[%s1 + $0x20] sm:$0xff]
  %v49 = vld [vmem:[%s1 + $0x28] sm:$0xff]
  %v50 = vld [vmem:[%s1 + $0x30] sm:$0xff]
  %v51 = vld [vmem:[%s1 + $0x38] sm:$0xff]
  %v52 = vld [vmem:[%s1 + $0x40] sm:$0xff]
  %v53 = vld [vmem:[%s1 + $0x48] sm:$0xff]
  %v54 = vld [vmem:[%s1 + $0x50] sm:$0xff]
  %v55 = vld [vmem:[%s1 + $0x58] sm:$0xff]
  %v56 = vld [vmem:[%s1 + $0x60] sm:$0xff]
  %v57 = vld [vmem:[%s1 + $0x68] sm:$0xff]
  %v58 = vld [vmem:[%s1 + $0x70] sm:$0xff]
  %v59 = vld [vmem:[%s1 + $0x78] sm:$0xff]
  %v60 = vld [vmem:[#allocation2 + $0x1] sm:$0xff]
  %v61 = vld [vmem:[#allocation2 + $0x9] sm:$0xff]
  %v62 = vld [vmem:[#allocation2 + $0x11] sm:$0xff]
  %v63 = vld [vmem:[#allocation2 + $0x19] sm:$0xff]
  %v64 = vld [vmem:[#allocation2 + $0x21] sm:$0x3]
  %s65 = scalar_lea.vmem %s1, 128
  %v66 = vld [vmem:[%s65] sm:$0xff]
  %v67 = vld [vmem:[%s65 + $0x8] sm:$0xff]
  %v68 = vld [vmem:[%s65 + $0x10] sm:$0xff]
  %v69 = vld [vmem:[%s65 + $0x18] sm:$0xff]
  %v70 = vld [vmem:[%s65 + $0x20] sm:$0xff]
  %v71 = vld [vmem:[%s65 + $0x28] sm:$0xff]
  %v72 = vld [vmem:[%s65 + $0x30] sm:$0xff]
  %v73 = vld [vmem:[%s65 + $0x38] sm:$0xff]
  %v74 = vld [vmem:[%s65 + $0x40] sm:$0xff]
  %v75 = vld [vmem:[%s65 + $0x48] sm:$0xff]
  %v76 = vld [vmem:[%s65 + $0x50] sm:$0xff]
  %v77 = vld [vmem:[%s65 + $0x58] sm:$0xff]
  %v78 = vld [vmem:[%s65 + $0x60] sm:$0xff]
  %v79 = vld [vmem:[%s65 + $0x68] sm:$0xff]
  %v80 = vld [vmem:[%s65 + $0x70] sm:$0xff]
  %v81 = vld [vmem:[%s65 + $0x78] sm:$0xff]
  %82 = vmatprep.subr.mxu0 0.0
  %83 = vmatpush1.msra.mxu0 %v66
  %84 = vmatprep.subr.mxu0 0.0
  %85 = vmatpush1.msra.mxu0 %v67
  %86 = vmatprep.subr.mxu0 0.0
  %87 = vmatpush1.msra.mxu0 %v68
  %88 = vmatprep.subr.mxu0 0.0
  %89 = vmatpush1.msra.mxu0 %v69
  %90 = vmatprep.subr.mxu0 0.0
  %91 = vmatpush1.msra.mxu0 %v70
  %92 = vmatprep.subr.mxu0 0.0
  %93 = vmatpush1.msra.mxu0 %v71
  %94 = vmatprep.subr.mxu0 0.0
  %95 = vmatpush1.msra.mxu0 %v72
  %96 = vmatprep.subr.mxu0 0.0
  %97 = vmatpush1.msra.mxu0 %v73
  %98 = vmatprep.subr.mxu0 0.0
  %99 = vmatpush1.msra.mxu0 %v74
  %100 = vmatprep.subr.mxu0 0.0
  %101 = vmatpush1.msra.mxu0 %v75
  %102 = vmatprep.subr.mxu0 0.0
  %103 = vmatpush1.msra.mxu0 %v76
  %104 = vmatprep.subr.mxu0 0.0
  %105 = vmatpush1.msra.mxu0 %v77
  %106 = vmatprep.subr.mxu0 0.0
  %107 = vmatpush1.msra.mxu0 %v78
  %108 = vmatprep.subr.mxu0 0.0
  %109 = vmatpush1.msra.mxu0 %v79
  %110 = vmatprep.subr.mxu0 0.0
  %111 = vmatpush1.msra.mxu0 %v80
  %112 = vmatprep.subr.mxu0 0.0
  %113 = vmatpush1.msra.mxu0 %v81
  %114 = vmatprep.subr.mxu0 0.0
  %115 = vmatpush1.msra.mxu0 0.0
  %116 = vmatprep.subr.mxu0 0.0
  %117 = vmatpush1.msra.mxu0 0.0
  %118 = vmatprep.subr.mxu0 0.0
  %119 = vmatpush1.msra.mxu0 0.0
  %120 = vmatprep.subr.mxu0 0.0
  %121 = vmatpush1.msra.mxu0 0.0
  %122 = vmatprep.subr.mxu0 0.0
  %123 = vmatpush1.msra.mxu0 0.0
  %124 = vmatprep.subr.mxu0 0.0
  %125 = vmatpush1.msra.mxu0 0.0
  %126 = vmatprep.subr.mxu0 0.0
  %127 = vmatpush1.msra.mxu0 0.0
  %128 = vmatprep.subr.mxu0 0.0
  %129 = vmatpush1.msra.mxu0 0.0
  %130 = vmatprep.subr.mxu0 0.0
  %131 = vmatpush1.msra.mxu0 0.0
  %132 = vmatprep.subr.mxu0 0.0
  %133 = vmatpush1.msra.mxu0 0.0
  %134 = vmatprep.subr.mxu0 0.0
  %135 = vmatpush1.msra.mxu0 0.0
  %136 = vmatprep.subr.mxu0 0.0
  %137 = vmatpush1.msra.mxu0 0.0
  %138 = vmatprep.subr.mxu0 0.0
  %139 = vmatpush1.msra.mxu0 0.0
  %140 = vmatprep.subr.mxu0 0.0
  %141 = vmatpush1.msra.mxu0 0.0
  %142 = vmatprep.subr.mxu0 0.0
  %143 = vmatpush1.msra.mxu0 0.0
  %144 = vmatprep.subr.mxu0 0.0
  %145 = vmatpush1.msra.mxu0 0.0
  %146 = vmatprep.mubr.f32.mxu0 0.0
  %147 = vmatmul.mubr.f32.gmra.mrb[0].mxu0 %v60
  %v148 = vpop.f32.mrb[0].mxu0
  %v149 = vadd.f32 0.0, %v148
  %v150 = vpop.f32.mrb[0].mxu0
  %151 = vmatprep.mubr.f32.mxu0 0.0
  %152 = vmatmul.mubr.f32.gmra.mrb[0].mxu0 %v61
  %v153 = vpop.f32.mrb[0].mxu0
  %v154 = vadd.f32 0.0, %v153
  %v155 = vpop.f32.mrb[0].mxu0
  %156 = vmatprep.mubr.f32.mxu0 0.0
  %157 = vmatmul.mubr.f32.gmra.mrb[0].mxu0 %v62
  %v158 = vpop.f32.mrb[0].mxu0
  %v159 = vadd.f32 0.0, %v158
  %v160 = vpop.f32.mrb[0].mxu0
  %161 = vmatprep.mubr.f32.mxu0 0.0
  %162 = vmatmul.mubr.f32.gmra.mrb[0].mxu0 %v63
  %v163 = vpop.f32.mrb[0].mxu0
  %v164 = vadd.f32 0.0, %v163
  %v165 = vpop.f32.mrb[0].mxu0
  %166 = vmatprep.mubr.f32.mxu0 0.0
  %167 = vmatmul.mubr.f32.gmra.mrb[0].mxu0 %v64
  %v168 = vpop.f32.mrb[0].mxu0
  %v169 = vadd.f32 0.0, %v168
  %v170 = vpop.f32.mrb[0].mxu0
  %171 = vdwg.mxu0
  %172 = vmatprep.subr.mxu0 0.0
  %173 = vmatpush1.msra.mxu0 %v44
  %174 = vmatprep.subr.mxu0 0.0
  %175 = vmatpush1.msra.mxu0 %v45
  %176 = vmatprep.subr.mxu0 0.0
  %177 = vmatpush1.msra.mxu0 %v46
  %178 = vmatprep.subr.mxu0 0.0
  %179 = vmatpush1.msra.mxu0 %v47
  %180 = vmatprep.subr.mxu0 0.0
  %181 = vmatpush1.msra.mxu0 %v48
  %182 = vmatprep.subr.mxu0 0.0
  %183 = vmatpush1.msra.mxu0 %v49
  %184 = vmatprep.subr.mxu0 0.0
  %185 = vmatpush1.msra.mxu0 %v50
  %186 = vmatprep.subr.mxu0 0.0
  %187 = vmatpush1.msra.mxu0 %v51
  %188 = vmatprep.subr.mxu0 0.0
  %189 = vmatpush1.msra.mxu0 %v52
  %190 = vmatprep.subr.mxu0 0.0
  %191 = vmatpush1.msra.mxu0 %v53
  %192 = vmatprep.subr.mxu0 0.0
  %193 = vmatpush1.msra.mxu0 %v54
  %194 = vmatprep.subr.mxu0 0.0
  %195 = vmatpush1.msra.mxu0 %v55
  %196 = vmatprep.subr.mxu0 0.0
  %197 = vmatpush1.msra.mxu0 %v56
  %198 = vmatprep.subr.mxu0 0.0
  %199 = vmatpush1.msra.mxu0 %v57
  %200 = vmatprep.subr.mxu0 0.0
  %201 = vmatpush1.msra.mxu0 %v58
  %202 = vmatprep.subr.mxu0 0.0
  %203 = vmatpush1.msra.mxu0 %v59
  %204 = vmatprep.subr.mxu0 0.0
  %205 = vmatpush1.msra.mxu0 0.0
  %206 = vmatprep.subr.mxu0 0.0
  %207 = vmatpush1.msra.mxu0 0.0
  %208 = vmatprep.subr.mxu0 0.0
  %209 = vmatpush1.msra.mxu0 0.0
  %210 = vmatprep.subr.mxu0 0.0
  %211 = vmatpush1.msra.mxu0 0.0
  %212 = vmatprep.subr.mxu0 0.0
  %213 = vmatpush1.msra.mxu0 0.0
  %214 = vmatprep.subr.mxu0 0.0
  %215 = vmatpush1.msra.mxu0 0.0
  %216 = vmatprep.subr.mxu0 0.0
  %217 = vmatpush1.msra.mxu0 0.0
  %218 = vmatprep.subr.mxu0 0.0
  %219 = vmatpush1.msra.mxu0 0.0
  %220 = vmatprep.subr.mxu0 0.0
  %221 = vmatpush1.msra.mxu0 0.0
  %222 = vmatprep.subr.mxu0 0.0
  %223 = vmatpush1.msra.mxu0 0.0
  %224 = vmatprep.subr.mxu0 0.0
  %225 = vmatpush1.msra.mxu0 0.0
  %226 = vmatprep.subr.mxu0 0.0
  %227 = vmatpush1.msra.mxu0 0.0
  %228 = vmatprep.subr.mxu0 0.0
  %229 = vmatpush1.msra.mxu0 0.0
  %230 = vmatprep.subr.mxu0 0.0
  %231 = vmatpush1.msra.mxu0 0.0
  %232 = vmatprep.subr.mxu0 0.0
  %233 = vmatpush1.msra.mxu0 0.0
  %234 = vmatprep.subr.mxu0 0.0
  %235 = vmatpush1.msra.mxu0 0.0
  %236 = vmatprep.mubr.f32.mxu0 0.0
  %237 = vmatmul.mubr.f32.gmra.mrb[0].mxu0 %v39
  %v238 = vpop.f32.mrb[0].mxu0
  %v239 = vadd.f32 %v149, %v238
  %v240 = vpop.f32.mrb[0].mxu0
  %241 = vmatprep.mubr.f32.mxu0 0.0
  %242 = vmatmul.mubr.f32.gmra.mrb[0].mxu0 %v40
  %v243 = vpop.f32.mrb[0].mxu0
  %v244 = vadd.f32 %v154, %v243
  %v245 = vpop.f32.mrb[0].mxu0
  %246 = vmatprep.mubr.f32.mxu0 0.0
  %247 = vmatmul.mubr.f32.gmra.mrb[0].mxu0 %v41
  %v248 = vpop.f32.mrb[0].mxu0
  %v249 = vadd.f32 %v159, %v248
  %v250 = vpop.f32.mrb[0].mxu0
  %251 = vmatprep.mubr.f32.mxu0 0.0
  %252 = vmatmul.mubr.f32.gmra.mrb[0].mxu0 %v42
  %v253 = vpop.f32.mrb[0].mxu0
  %v254 = vadd.f32 %v164, %v253
  %v255 = vpop.f32.mrb[0].mxu0
  %256 = vmatprep.mubr.f32.mxu0 0.0
  %257 = vmatmul.mubr.f32.gmra.mrb[0].mxu0 %v43
  %v258 = vpop.f32.mrb[0].mxu0
  %v259 = vadd.f32 %v169, %v258
  %v260 = vpop.f32.mrb[0].mxu0
  %261 = vdwg.mxu0
  %v262 = vld [vmem:[#allocation2 + $0x2] sm:$0xff]
  %v263 = vld [vmem:[#allocation2 + $0xa] sm:$0xff]
  %v264 = vld [vmem:[#allocation2 + $0x12] sm:$0xff]
  %v265 = vld [vmem:[#allocation2 + $0x1a] sm:$0xff]
  %v266 = vld [vmem:[#allocation2 + $0x22] sm:$0x3]
  %s267 = scalar_lea.vmem %s1, 256
  %v268 = vld [vmem:[%s267] sm:$0xff]
  %v269 = vld [vmem:[%s267 + $0x8] sm:$0xff]
  %v270 = vld [vmem:[%s267 + $0x10] sm:$0xff]
  %v271 = vld [vmem:[%s267 + $0x18] sm:$0xff]
  %v272 = vld [vmem:[%s267 + $0x20] sm:$0xff]
  %v273 = vld [vmem:[%s267 + $0x28] sm:$0xff]
  %v274 = vld [vmem:[%s267 + $0x30] sm:$0xff]
  %v275 = vld [vmem:[%s267 + $0x38] sm:$0xff]
  %v276 = vld [vmem:[%s267 + $0x40] sm:$0xff]
  %v277 = vld [vmem:[%s267 + $0x48] sm:$0xff]
  %v278 = vld [vmem:[%s267 + $0x50] sm:$0xff]
  %v279 = vld [vmem:[%s267 + $0x58] sm:$0xff]
  %v280 = vld [vmem:[%s267 + $0x60] sm:$0xff]
  %v281 = vld [vmem:[%s267 + $0x68] sm:$0xff]
  %v282 = vld [vmem:[%s267 + $0x70] sm:$0xff]
  %v283 = vld [vmem:[%s267 + $0x78] sm:$0xff]
  %284 = vmatprep.subr.mxu0 0.0
  %285 = vmatpush1.msra.mxu0 %v268
  %286 = vmatprep.subr.mxu0 0.0
  %287 = vmatpush1.msra.mxu0 %v269
  %288 = vmatprep.subr.mxu0 0.0
  %289 = vmatpush1.msra.mxu0 %v270
  %290 = vmatprep.subr.mxu0 0.0
  %291 = vmatpush1.msra.mxu0 %v271
  %292 = vmatprep.subr.mxu0 0.0
  %293 = vmatpush1.msra.mxu0 %v272
  %294 = vmatprep.subr.mxu0 0.0
  %295 = vmatpush1.msra.mxu0 %v273
  %296 = vmatprep.subr.mxu0 0.0
  %297 = vmatpush1.msra.mxu0 %v274
  %298 = vmatprep.subr.mxu0 0.0
  %299 = vmatpush1.msra.mxu0 %v275
  %300 = vmatprep.subr.mxu0 0.0
  %301 = vmatpush1.msra.mxu0 %v276
  %302 = vmatprep.subr.mxu0 0.0
  %303 = vmatpush1.msra.mxu0 %v277
  %304 = vmatprep.subr.mxu0 0.0
  %305 = vmatpush1.msra.mxu0 %v278
  %306 = vmatprep.subr.mxu0 0.0
  %307 = vmatpush1.msra.mxu0 %v279
  %308 = vmatprep.subr.mxu0 0.0
  %309 = vmatpush1.msra.mxu0 %v280
  %310 = vmatprep.subr.mxu0 0.0
  %311 = vmatpush1.msra.mxu0 %v281
  %312 = vmatprep.subr.mxu0 0.0
  %313 = vmatpush1.msra.mxu0 %v282
  %314 = vmatprep.subr.mxu0 0.0
  %315 = vmatpush1.msra.mxu0 %v283
  %316 = vmatprep.subr.mxu0 0.0
  %317 = vmatpush1.msra.mxu0 0.0
  %318 = vmatprep.subr.mxu0 0.0
  %319 = vmatpush1.msra.mxu0 0.0
  %320 = vmatprep.subr.mxu0 0.0
  %321 = vmatpush1.msra.mxu0 0.0
  %322 = vmatprep.subr.mxu0 0.0
  %323 = vmatpush1.msra.mxu0 0.0
  %324 = vmatprep.subr.mxu0 0.0
  %325 = vmatpush1.msra.mxu0 0.0
  %326 = vmatprep.subr.mxu0 0.0
  %327 = vmatpush1.msra.mxu0 0.0
  %328 = vmatprep.subr.mxu0 0.0
  %329 = vmatpush1.msra.mxu0 0.0
  %330 = vmatprep.subr.mxu0 0.0
  %331 = vmatpush1.msra.mxu0 0.0
  %332 = vmatprep.subr.mxu0 0.0
  %333 = vmatpush1.msra.mxu0 0.0
  %334 = vmatprep.subr.mxu0 0.0
  %335 = vmatpush1.msra.mxu0 0.0
  %336 = vmatprep.subr.mxu0 0.0
  %337 = vmatpush1.msra.mxu0 0.0
  %338 = vmatprep.subr.mxu0 0.0
  %339 = vmatpush1.msra.mxu0 0.0
  %340 = vmatprep.subr.mxu0 0.0
  %341 = vmatpush1.msra.mxu0 0.0
  %342 = vmatprep.subr.mxu0 0.0
  %343 = vmatpush1.msra.mxu0 0.0
  %344 = vmatprep.subr.mxu0 0.0
  %345 = vmatpush1.msra.mxu0 0.0
  %346 = vmatprep.subr.mxu0 0.0
  %347 = vmatpush1.msra.mxu0 0.0
  %348 = vmatprep.mubr.f32.mxu0 0.0
  %349 = vmatmul.mubr.f32.gmra.mrb[0].mxu0 %v262
  %v350 = vpop.f32.mrb[0].mxu0
  %v351 = vadd.f32 0.0, %v350
  %v352 = vpop.f32.mrb[0].mxu0
  %353 = vmatprep.mubr.f32.mxu0 0.0
  %354 = vmatmul.mubr.f32.gmra.mrb[0].mxu0 %v263
  %v355 = vpop.f32.mrb[0].mxu0
  %v356 = vadd.f32 0.0, %v355
  %v357 = vpop.f32.mrb[0].mxu0
  %358 = vmatprep.mubr.f32.mxu0 0.0
  %359 = vmatmul.mubr.f32.gmra.mrb[0].mxu0 %v264
  %v360 = vpop.f32.mrb[0].mxu0
  %v361 = vadd.f32 0.0, %v360
  %v362 = vpop.f32.mrb[0].mxu0
  %363 = vmatprep.mubr.f32.mxu0 0.0
  %364 = vmatmul.mubr.f32.gmra.mrb[0].mxu0 %v265
  %v365 = vpop.f32.mrb[0].mxu0
  %v366 = vadd.f32 0.0, %v365
  %v367 = vpop.f32.mrb[0].mxu0
  %368 = vmatprep.mubr.f32.mxu0 0.0
  %369 = vmatmul.mubr.f32.gmra.mrb[0].mxu0 %v266
  %v370 = vpop.f32.mrb[0].mxu0
  %v371 = vadd.f32 0.0, %v370
  %v372 = vpop.f32.mrb[0].mxu0
  %373 = vdwg.mxu0
  %v374 = vadd.f32 %v239, %v351
  %v375 = vadd.f32 %v244, %v356
  %v376 = vadd.f32 %v249, %v361
  %v377 = vadd.f32 %v254, %v366
  %v378 = vadd.f32 %v259, %v371
  %v379 = vld [vmem:[%s2] sm:$0x1]
  %v381 = vlaneseq
  %v382 = vshrl.u32 %v381, 7
  %v383 = vsub.s32 0, %v382
  %v384 = vrot.slane %v379, %v383
  %v386 = vmul.f32 %v374, %v384
  %v387 = vmul.f32 %v375, %v384
  %v388 = vmul.f32 %v376, %v384
  %v389 = vmul.f32 %v377, %v384
  %v390 = vmul.f32 %v378, %v384
  %v391 = vld [vmem:[%s3] sm:$0x1]
  %v393 = vlaneseq
  %v394 = vshrl.u32 %v393, 7
  %v395 = vsub.s32 0, %v394
  %v396 = vrot.slane %v391, %v395
  %v398 = vadd.f32 %v386, %v396
  %v399 = vadd.f32 %v387, %v396
  %v400 = vadd.f32 %v388, %v396
  %v401 = vadd.f32 %v389, %v396
  %v402 = vadd.f32 %v390, %v396
  %v403 = vmax.f32 %v398, 0.0
  %v404 = vmax.f32 %v399, 0.0
  %v405 = vmax.f32 %v400, 0.0
  %v406 = vmax.f32 %v401, 0.0
  %v407 = vmax.f32 %v402, 0.0
  %408 = vst [vmem:[#allocation2 + $0x1] sm:$0xff] %v403
  %409 = vst [vmem:[#allocation2 + $0x9] sm:$0xff] %v404
  %410 = vst [vmem:[#allocation2 + $0x11] sm:$0xfc] %v405
  %411 = vst [vmem:[#allocation2 + $0x19] sm:$0xff] %v406
  %412 = vst [vmem:[#allocation2 + $0x21] sm:$0x3] %v407
  %v413 = vld [vmem:[#allocation2] sm:$0xff]
  %v414 = vld [vmem:[#allocation2 + $0x8] sm:$0xff]
  %v415 = vld [vmem:[#allocation2 + $0x10] sm:$0xff]
  %v416 = vld [vmem:[#allocation2 + $0x18] sm:$0xff]
  %v417 = vld [vmem:[#allocation2 + $0x20] sm:$0x3]
  %v418 = vld [vmem:[%s4] sm:$0xff]
  %v419 = vld [vmem:[%s4 + $0x8] sm:$0xff]
  %v420 = vld [vmem:[%s4 + $0x10] sm:$0xff]
  %v421 = vld [vmem:[%s4 + $0x18] sm:$0xff]
  %v422 = vld [vmem:[%s4 + $0x20] sm:$0xff]
  %v423 = vld [vmem:[%s4 + $0x28] sm:$0xff]
  %v424 = vld [vmem:[%s4 + $0x30] sm:$0xff]
  %v425 = vld [vmem:[%s4 + $0x38] sm:$0xff]
  %v426 = vld [vmem:[%s4 + $0x40] sm:$0xff]
  %v427 = vld [vmem:[%s4 + $0x48] sm:$0xff]
  %v428 = vld [vmem:[%s4 + $0x50] sm:$0xff]
  %v429 = vld [vmem:[%s4 + $0x58] sm:$0xff]
  %v430 = vld [vmem:[%s4 + $0x60] sm:$0xff]
  %v431 = vld [vmem:[%s4 + $0x68] sm:$0xff]
  %v432 = vld [vmem:[%s4 + $0x70] sm:$0xff]
  %v433 = vld [vmem:[%s4 + $0x78] sm:$0xff]
  %v434 = vld [vmem:[#allocation2 + $0x1] sm:$0xff]
  %v435 = vld [vmem:[#allocation2 + $0x9] sm:$0xff]
  %v436 = vld [vmem:[#allocation2 + $0x11] sm:$0xff]
  %v437 = vld [vmem:[#allocation2 + $0x19] sm:$0xff]
  %v438 = vld [vmem:[#allocation2 + $0x21] sm:$0x3]
  %s439 = scalar_lea.vmem %s4, 128
  %v440 = vld [vmem:[%s439] sm:$0xff]
  %v441 = vld [vmem:[%s439 + $0x8] sm:$0xff]
  %v442 = vld [vmem:[%s439 + $0x10] sm:$0xff]
  %v443 = vld [vmem:[%s439 + $0x18] sm:$0xff]
  %v444 = vld [vmem:[%s439 + $0x20] sm:$0xff]
  %v445 = vld [vmem:[%s439 + $0x28] sm:$0xff]
  %v446 = vld [vmem:[%s439 + $0x30] sm:$0xff]
  %v447 = vld [vmem:[%s439 + $0x38] sm:$0xff]
  %v448 = vld [vmem:[%s439 + $0x40] sm:$0xff]
  %v449 = vld [vmem:[%s439 + $0x48] sm:$0xff]
  %v450 = vld [vmem:[%s439 + $0x50] sm:$0xff]
  %v451 = vld [vmem:[%s439 + $0x58] sm:$0xff]
  %v452 = vld [vmem:[%s439 + $0x60] sm:$0xff]
  %v453 = vld [vmem:[%s439 + $0x68] sm:$0xff]
  %v454 = vld [vmem:[%s439 + $0x70] sm:$0xff]
  %v455 = vld [vmem:[%s439 + $0x78] sm:$0xff]
  %456 = vmatprep.subr.mxu0 0.0
  %457 = vmatpush1.msra.mxu0 %v440
  %458 = vmatprep.subr.mxu0 0.0
  %459 = vmatpush1.msra.mxu0 %v441
  %460 = vmatprep.subr.mxu0 0.0
  %461 = vmatpush1.msra.mxu0 %v442
  %462 = vmatprep.subr.mxu0 0.0
  %463 = vmatpush1.msra.mxu0 %v443
  %464 = vmatprep.subr.mxu0 0.0
  %465 = vmatpush1.msra.mxu0 %v444
  %466 = vmatprep.subr.mxu0 0.0
  %467 = vmatpush1.msra.mxu0 %v445
  %468 = vmatprep.subr.mxu0 0.0
  %469 = vmatpush1.msra.mxu0 %v446
  %470 = vmatprep.subr.mxu0 0.0
  %471 = vmatpush1.msra.mxu0 %v447
  %472 = vmatprep.subr.mxu0 0.0
  %473 = vmatpush1.msra.mxu0 %v448
  %474 = vmatprep.subr.mxu0 0.0
  %475 = vmatpush1.msra.mxu0 %v449
  %476 = vmatprep.subr.mxu0 0.0
  %477 = vmatpush1.msra.mxu0 %v450
  %478 = vmatprep.subr.mxu0 0.0
  %479 = vmatpush1.msra.mxu0 %v451
  %480 = vmatprep.subr.mxu0 0.0
  %481 = vmatpush1.msra.mxu0 %v452
  %482 = vmatprep.subr.mxu0 0.0
  %483 = vmatpush1.msra.mxu0 %v453
  %484 = vmatprep.subr.mxu0 0.0
  %485 = vmatpush1.msra.mxu0 %v454
  %486 = vmatprep.subr.mxu0 0.0
  %487 = vmatpush1.msra.mxu0 %v455
  %488 = vmatprep.subr.mxu0 0.0
  %489 = vmatpush1.msra.mxu0 0.0
  %490 = vmatprep.subr.mxu0 0.0
  %491 = vmatpush1.msra.mxu0 0.0
  %492 = vmatprep.subr.mxu0 0.0
  %493 = vmatpush1.msra.mxu0 0.0
  %494 = vmatprep.subr.mxu0 0.0
  %495 = vmatpush1.msra.mxu0 0.0
  %496 = vmatprep.subr.mxu0 0.0
  %497 = vmatpush1.msra.mxu0 0.0
  %498 = vmatprep.subr.mxu0 0.0
  %499 = vmatpush1.msra.mxu0 0.0
  %500 = vmatprep.subr.mxu0 0.0
  %501 = vmatpush1.msra.mxu0 0.0
  %502 = vmatprep.subr.mxu0 0.0
  %503 = vmatpush1.msra.mxu0 0.0
  %504 = vmatprep.subr.mxu0 0.0
  %505 = vmatpush1.msra.mxu0 0.0
  %506 = vmatprep.subr.mxu0 0.0
  %507 = vmatpush1.msra.mxu0 0.0
  %508 = vmatprep.subr.mxu0 0.0
  %509 = vmatpush1.msra.mxu0 0.0
  %510 = vmatprep.subr.mxu0 0.0
  %511 = vmatpush1.msra.mxu0 0.0
  %512 = vmatprep.subr.mxu0 0.0
  %513 = vmatpush1.msra.mxu0 0.0
  %514 = vmatprep.subr.mxu0 0.0
  %515 = vmatpush1.msra.mxu0 0.0
  %516 = vmatprep.subr.mxu0 0.0
  %517 = vmatpush1.msra.mxu0 0.0
  %518 = vmatprep.subr.mxu0 0.0
  %519 = vmatpush1.msra.mxu0 0.0
  %520 = vmatprep.mubr.f32.mxu0 0.0
  %521 = vmatmul.mubr.f32.gmra.mrb[0].mxu0 %v434
  %v522 = vpop.f32.mrb[0].mxu0
  %v523 = vadd.f32 0.0, %v522
  %v524 = vpop.f32.mrb[0].mxu0
  %525 = vmatprep.mubr.f32.mxu0 0.0
  %526 = vmatmul.mubr.f32.gmra.mrb[0].mxu0 %v435
  %v527 = vpop.f32.mrb[0].mxu0
  %v528 = vadd.f32 0.0, %v527
  %v529 = vpop.f32.mrb[0].mxu0
  %530 = vmatprep.mubr.f32.mxu0 0.0
  %531 = vmatmul.mubr.f32.gmra.mrb[0].mxu0 %v436
  %v532 = vpop.f32.mrb[0].mxu0
  %v533 = vadd.f32 0.0, %v532
  %v534 = vpop.f32.mrb[0].mxu0
  %535 = vmatprep.mubr.f32.mxu0 0.0
  %536 = vmatmul.mubr.f32.gmra.mrb[0].mxu0 %v437
  %v537 = vpop.f32.mrb[0].mxu0
  %v538 = vadd.f32 0.0, %v537
  %v539 = vpop.f32.mrb[0].mxu0
  %540 = vmatprep.mubr.f32.mxu0 0.0
  %541 = vmatmul.mubr.f32.gmra.mrb[0].mxu0 %v438
  %v542 = vpop.f32.mrb[0].mxu0
  %v543 = vadd.f32 0.0, %v542
  %v544 = vpop.f32.mrb[0].mxu0
  %545 = vdwg.mxu0
  %546 = vmatprep.subr.mxu0 0.0
  %547 = vmatpush1.msra.mxu0 %v418
  %548 = vmatprep.subr.mxu0 0.0
  %549 = vmatpush1.msra.mxu0 %v419
  %550 = vmatprep.subr.mxu0 0.0
  %551 = vmatpush1.msra.mxu0 %v420
  %552 = vmatprep.subr.mxu0 0.0
  %553 = vmatpush1.msra.mxu0 %v421
  %554 = vmatprep.subr.mxu0 0.0
  %555 = vmatpush1.msra.mxu0 %v422
  %556 = vmatprep.subr.mxu0 0.0
  %557 = vmatpush1.msra.mxu0 %v423
  %558 = vmatprep.subr.mxu0 0.0
  %559 = vmatpush1.msra.mxu0 %v424
  %560 = vmatprep.subr.mxu0 0.0
  %561 = vmatpush1.msra.mxu0 %v425
  %562 = vmatprep.subr.mxu0 0.0
  %563 = vmatpush1.msra.mxu0 %v426
  %564 = vmatprep.subr.mxu0 0.0
  %565 = vmatpush1.msra.mxu0 %v427
  %566 = vmatprep.subr.mxu0 0.0
  %567 = vmatpush1.msra.mxu0 %v428
  %568 = vmatprep.subr.mxu0 0.0
  %569 = vmatpush1.msra.mxu0 %v429
  %570 = vmatprep.subr.mxu0 0.0
  %571 = vmatpush1.msra.mxu0 %v430
  %572 = vmatprep.subr.mxu0 0.0
  %573 = vmatpush1.msra.mxu0 %v431
  %574 = vmatprep.subr.mxu0 0.0
  %575 = vmatpush1.msra.mxu0 %v432
  %576 = vmatprep.subr.mxu0 0.0
  %577 = vmatpush1.msra.mxu0 %v433
  %578 = vmatprep.subr.mxu0 0.0
  %579 = vmatpush1.msra.mxu0 0.0
  %580 = vmatprep.subr.mxu0 0.0
  %581 = vmatpush1.msra.mxu0 0.0
  %582 = vmatprep.subr.mxu0 0.0
  %583 = vmatpush1.msra.mxu0 0.0
  %584 = vmatprep.subr.mxu0 0.0
  %585 = vmatpush1.msra.mxu0 0.0
  %586 = vmatprep.subr.mxu0 0.0
  %587 = vmatpush1.msra.mxu0 0.0
  %588 = vmatprep.subr.mxu0 0.0
  %589 = vmatpush1.msra.mxu0 0.0
  %590 = vmatprep.subr.mxu0 0.0
  %591 = vmatpush1.msra.mxu0 0.0
  %592 = vmatprep.subr.mxu0 0.0
  %593 = vmatpush1.msra.mxu0 0.0
  %594 = vmatprep.subr.mxu0 0.0
  %595 = vmatpush1.msra.mxu0 0.0
  %596 = vmatprep.subr.mxu0 0.0
  %597 = vmatpush1.msra.mxu0 0.0
  %598 = vmatprep.subr.mxu0 0.0
  %599 = vmatpush1.msra.mxu0 0.0
  %600 = vmatprep.subr.mxu0 0.0
  %601 = vmatpush1.msra.mxu0 0.0
  %602 = vmatprep.subr.mxu0 0.0
  %603 = vmatpush1.msra.mxu0 0.0
  %604 = vmatprep.subr.mxu0 0.0
  %605 = vmatpush1.msra.mxu0 0.0
  %606 = vmatprep.subr.mxu0 0.0
  %607 = vmatpush1.msra.mxu0 0.0
  %608 = vmatprep.subr.mxu0 0.0
  %609 = vmatpush1.msra.mxu0 0.0
  %610 = vmatprep.mubr.f32.mxu0 0.0
  %611 = vmatmul.mubr.f32.gmra.mrb[0].mxu0 %v413
  %v612 = vpop.f32.mrb[0].mxu0
  %v613 = vadd.f32 %v523, %v612
  %v614 = vpop.f32.mrb[0].mxu0
  %615 = vmatprep.mubr.f32.mxu0 0.0
  %616 = vmatmul.mubr.f32.gmra.mrb[0].mxu0 %v414
  %v617 = vpop.f32.mrb[0].mxu0
  %v618 = vadd.f32 %v528, %v617
  %v619 = vpop.f32.mrb[0].mxu0
  %620 = vmatprep.mubr.f32.mxu0 0.0
  %621 = vmatmul.mubr.f32.gmra.mrb[0].mxu0 %v415
  %v622 = vpop.f32.mrb[0].mxu0
  %v623 = vadd.f32 %v533, %v622
  %v624 = vpop.f32.mrb[0].mxu0
  %625 = vmatprep.mubr.f32.mxu0 0.0
  %626 = vmatmul.mubr.f32.gmra.mrb[0].mxu0 %v416
  %v627 = vpop.f32.mrb[0].mxu0
  %v628 = vadd.f32 %v538, %v627
  %v629 = vpop.f32.mrb[0].mxu0
  %630 = vmatprep.mubr.f32.mxu0 0.0
  %631 = vmatmul.mubr.f32.gmra.mrb[0].mxu0 %v417
  %v632 = vpop.f32.mrb[0].mxu0
  %v633 = vadd.f32 %v543, %v632
  %v634 = vpop.f32.mrb[0].mxu0
  %635 = vdwg.mxu0
  %v636 = vld [vmem:[#allocation2 + $0x2] sm:$0xff]
  %v637 = vld [vmem:[#allocation2 + $0xa] sm:$0xff]
  %v638 = vld [vmem:[#allocation2 + $0x12] sm:$0xff]
  %v639 = vld [vmem:[#allocation2 + $0x1a] sm:$0xff]
  %v640 = vld [vmem:[#allocation2 + $0x22] sm:$0x3]
  %s641 = scalar_lea.vmem %s4, 256
  %v642 = vld [vmem:[%s641] sm:$0xff]
  %v643 = vld [vmem:[%s641 + $0x8] sm:$0xff]
  %v644 = vld [vmem:[%s641 + $0x10] sm:$0xff]
  %v645 = vld [vmem:[%s641 + $0x18] sm:$0xff]
  %v646 = vld [vmem:[%s641 + $0x20] sm:$0xff]
  %v647 = vld [vmem:[%s641 + $0x28] sm:$0xff]
  %v648 = vld [vmem:[%s641 + $0x30] sm:$0xff]
  %v649 = vld [vmem:[%s641 + $0x38] sm:$0xff]
  %v650 = vld [vmem:[%s641 + $0x40] sm:$0xff]
  %v651 = vld [vmem:[%s641 + $0x48] sm:$0xff]
  %v652 = vld [vmem:[%s641 + $0x50] sm:$0xff]
  %v653 = vld [vmem:[%s641 + $0x58] sm:$0xff]
  %v654 = vld [vmem:[%s641 + $0x60] sm:$0xff]
  %v655 = vld [vmem:[%s641 + $0x68] sm:$0xff]
  %v656 = vld [vmem:[%s641 + $0x70] sm:$0xff]
  %v657 = vld [vmem:[%s641 + $0x78] sm:$0xff]
  %658 = vmatprep.subr.mxu0 0.0
  %659 = vmatpush1.msra.mxu0 %v642
  %660 = vmatprep.subr.mxu0 0.0
  %661 = vmatpush1.msra.mxu0 %v643
  %662 = vmatprep.subr.mxu0 0.0
  %663 = vmatpush1.msra.mxu0 %v644
  %664 = vmatprep.subr.mxu0 0.0
  %665 = vmatpush1.msra.mxu0 %v645
  %666 = vmatprep.subr.mxu0 0.0
  %667 = vmatpush1.msra.mxu0 %v646
  %668 = vmatprep.subr.mxu0 0.0
  %669 = vmatpush1.msra.mxu0 %v647
  %670 = vmatprep.subr.mxu0 0.0
  %671 = vmatpush1.msra.mxu0 %v648
  %672 = vmatprep.subr.mxu0 0.0
  %673 = vmatpush1.msra.mxu0 %v649
  %674 = vmatprep.subr.mxu0 0.0
  %675 = vmatpush1.msra.mxu0 %v650
  %676 = vmatprep.subr.mxu0 0.0
  %677 = vmatpush1.msra.mxu0 %v651
  %678 = vmatprep.subr.mxu0 0.0
  %679 = vmatpush1.msra.mxu0 %v652
  %680 = vmatprep.subr.mxu0 0.0
  %681 = vmatpush1.msra.mxu0 %v653
  %682 = vmatprep.subr.mxu0 0.0
  %683 = vmatpush1.msra.mxu0 %v654
  %684 = vmatprep.subr.mxu0 0.0
  %685 = vmatpush1.msra.mxu0 %v655
  %686 = vmatprep.subr.mxu0 0.0
  %687 = vmatpush1.msra.mxu0 %v656
  %688 = vmatprep.subr.mxu0 0.0
  %689 = vmatpush1.msra.mxu0 %v657
  %690 = vmatprep.subr.mxu0 0.0
  %691 = vmatpush1.msra.mxu0 0.0
  %692 = vmatprep.subr.mxu0 0.0
  %693 = vmatpush1.msra.mxu0 0.0
  %694 = vmatprep.subr.mxu0 0.0
  %695 = vmatpush1.msra.mxu0 0.0
  %696 = vmatprep.subr.mxu0 0.0
  %697 = vmatpush1.msra.mxu0 0.0
  %698 = vmatprep.subr.mxu0 0.0
  %699 = vmatpush1.msra.mxu0 0.0
  %700 = vmatprep.subr.mxu0 0.0
  %701 = vmatpush1.msra.mxu0 0.0
  %702 = vmatprep.subr.mxu0 0.0
  %703 = vmatpush1.msra.mxu0 0.0
  %704 = vmatprep.subr.mxu0 0.0
  %705 = vmatpush1.msra.mxu0 0.0
  %706 = vmatprep.subr.mxu0 0.0
  %707 = vmatpush1.msra.mxu0 0.0
  %708 = vmatprep.subr.mxu0 0.0
  %709 = vmatpush1.msra.mxu0 0.0
  %710 = vmatprep.subr.mxu0 0.0
  %711 = vmatpush1.msra.mxu0 0.0
  %712 = vmatprep.subr.mxu0 0.0
  %713 = vmatpush1.msra.mxu0 0.0
  %714 = vmatprep.subr.mxu0 0.0
  %715 = vmatpush1.msra.mxu0 0.0
  %716 = vmatprep.subr.mxu0 0.0
  %717 = vmatpush1.msra.mxu0 0.0
  %718 = vmatprep.subr.mxu0 0.0
  %719 = vmatpush1.msra.mxu0 0.0
  %720 = vmatprep.subr.mxu0 0.0
  %721 = vmatpush1.msra.mxu0 0.0
  %722 = vmatprep.mubr.f32.mxu0 0.0
  %723 = vmatmul.mubr.f32.gmra.mrb[0].mxu0 %v636
  %v724 = vpop.f32.mrb[0].mxu0
  %v725 = vadd.f32 0.0, %v724
  %v726 = vpop.f32.mrb[0].mxu0
  %727 = vmatprep.mubr.f32.mxu0 0.0
  %728 = vmatmul.mubr.f32.gmra.mrb[0].mxu0 %v637
  %v729 = vpop.f32.mrb[0].mxu0
  %v730 = vadd.f32 0.0, %v729
  %v731 = vpop.f32.mrb[0].mxu0
  %732 = vmatprep.mubr.f32.mxu0 0.0
  %733 = vmatmul.mubr.f32.gmra.mrb[0].mxu0 %v638
  %v734 = vpop.f32.mrb[0].mxu0
  %v735 = vadd.f32 0.0, %v734
  %v736 = vpop.f32.mrb[0].mxu0
  %737 = vmatprep.mubr.f32.mxu0 0.0
  %738 = vmatmul.mubr.f32.gmra.mrb[0].mxu0 %v639
  %v739 = vpop.f32.mrb[0].mxu0
  %v740 = vadd.f32 0.0, %v739
  %v741 = vpop.f32.mrb[0].mxu0
  %742 = vmatprep.mubr.f32.mxu0 0.0
  %743 = vmatmul.mubr.f32.gmra.mrb[0].mxu0 %v640
  %v744 = vpop.f32.mrb[0].mxu0
  %v745 = vadd.f32 0.0, %v744
  %v746 = vpop.f32.mrb[0].mxu0
  %747 = vdwg.mxu0
  %v748 = vadd.f32 %v613, %v725
  %v749 = vadd.f32 %v618, %v730
  %v750 = vadd.f32 %v623, %v735
  %v751 = vadd.f32 %v628, %v740
  %v752 = vadd.f32 %v633, %v745
  %v753 = vld [vmem:[%s5] sm:$0x1]
  %v755 = vlaneseq
  %v756 = vshrl.u32 %v755, 7
  %v757 = vsub.s32 0, %v756
  %v758 = vrot.slane %v753, %v757
  %v760 = vmul.f32 %v748, %v758
  %v761 = vmul.f32 %v749, %v758
  %v762 = vmul.f32 %v750, %v758
  %v763 = vmul.f32 %v751, %v758
  %v764 = vmul.f32 %v752, %v758
  %v765 = vld [vmem:[%s6] sm:$0x1]
  %v767 = vlaneseq
  %v768 = vshrl.u32 %v767, 7
  %v769 = vsub.s32 0, %v768
  %v770 = vrot.slane %v765, %v769
  %v772 = vadd.f32 %v760, %v770
  %v773 = vadd.f32 %v761, %v770
  %v774 = vadd.f32 %v762, %v770
  %v775 = vadd.f32 %v763, %v770
  %v776 = vadd.f32 %v764, %v770
  %v777 = vld [vmem:[%s0] sm:$0xff]
  %v778 = vld [vmem:[%s0 + $0x8] sm:$0xff]
  %v779 = vadd.f32 %v772, %v777
  %v780 = vadd.f32 %v773, %v778
  %v781 = vmax.f32 %v779, 0.0
  %v782 = vmax.f32 %v780, 0.0
  %783 = vst [vmem:[%s7] sm:$0xff] %v781
  %784 = vst [vmem:[%s7 + $0x8] sm:$0xff] %v782
  %v785 = vld [vmem:[%s34] sm:$0xff]
  %v786 = vld [vmem:[%s34 + $0x8] sm:$0xff]
  %vm789 = vcmask 1041408
  %v790 = vrot.slane %v785, 6
  %v791 = vrot.slane %v786, 6
  %v792 = vsel %vm789, %v790, %v791
  %v796 = vadd.f32 %v774, %v790
  %v797 = vadd.f32 %v775, %v792
  %v798 = vadd.f32 %v776, %v791
  %v799 = vmax.f32 %v796, 0.0
  %v800 = vmax.f32 %v797, 0.0
  %v801 = vmax.f32 %v798, 0.0
  %s802 = scalar_lea.vmem %s7, 16
  %803 = vst [vmem:[%s802 - $0x2] sm:$0xfc] %v799
  %804 = vst [vmem:[%s802 + $0x6] sm:$0xff] %v800
  %805 = vst [vmem:[%s802 + $0xe] sm:$0x3] %v801
  // Predicated region
  $region30: #{resblock_forward.1} parent=0 // pred_check
    _
  $region31: #{resblock_forward.1} parent=0 // pred_check_branch
    %807 = sbr.rel (0) target = $region33
  $region32: #{resblock_forward.1} parent=0 // pred_region
    _
  $region33: #{resblock_forward.1} parent=0 // pred_fallthru
    _
  // Predicated region
  $region34: #{resblock_forward.1} parent=0 // pred_check
    _
  $region35: #{resblock_forward.1} parent=0 // pred_check_branch
    %809 = sbr.rel (0) target = $region37
  $region36: #{resblock_forward.1} parent=0 // pred_region
    _
  $region37: #{resblock_forward.1} parent=0 // pred_fallthru
    _

</llo_original>
